<compile_context>
chip_gen: v7x
topology: tpu7x:2x2x1
jax: 0.10.0
libtpu: 0.0.40
codegen_flags: <defaults>
</compile_context>

<pallas_src>
import jax
import jax.numpy as jnp
import numpy as np
from jax.experimental import pallas as pl
from jax.experimental.pallas import tpu as pltpu


_SMALL_N = 128  # N <= this -> un-padded single-block-per-batch path


# ----------------------------- helpers --------------------------------------


def _round_up(x, m):
    return ((x + m - 1) // m) * m


def _vmem_budget_bytes():
    """~Half of physical VMEM (64 MiB on v7x, 128 MiB on v5e/v6e)."""
    try:
        cap = int(pltpu.get_tpu_info().vmem_capacity_bytes)
    except Exception:
        cap = 64 << 20  # conservative (v7x-sized) fallback
    return cap // 2


def _choose_tile(N, stream_elem_bytes):
    """Pad N to a multiple of 128; pick the largest square tile (<=512) whose
    pipelined footprint (2 double-buffered input streams + the resident,
    double-buffered f32 output block) fits the per-generation VMEM budget."""
    n_pad = _round_up(max(N, 128), 128)
    budget = _vmem_budget_bytes()
    tile, need = 128, None
    for t in (512, 256, 128):
        if n_pad % t:
            continue
        req = 2 * 2 * t * t * stream_elem_bytes + 2 * t * t * 4
        if req <= budget:
            tile, need = t, req
            break
    if need is None:
        need = 2 * 2 * tile * tile * stream_elem_bytes + 2 * tile * tile * 4
    vmem_limit = int(min(budget, max(2 * need, 32 << 20)))
    return n_pad, tile, vmem_limit


# ----------------------------- kernels ---------------------------------------


def _bmm_tile_kernel(lhs_ref, rhs_ref, h_ref):
    """Grid (b, i, j, k). Output block index is constant across k, so the f32
    output tile stays resident in VMEM and we accumulate into it directly."""
    k = pl.program_id(3)
    prod = jnp.dot(lhs_ref[0], rhs_ref[0], preferred_element_type=jnp.float32)

    @pl.when(k == 0)
    def _():
        h_ref[0] = prod

    @pl.when(k > 0)
    def _():
        h_ref[0] += prod


def _bmm_small_kernel(lhs_ref, rhs_ref, h_ref):
    """Grid (b,). Whole (N, N) matrices per step (block shape == full dims)."""
    h_ref[0] = jnp.dot(lhs_ref[0], rhs_ref[0],
                       preferred_element_type=jnp.float32)


# ----------------------------- wrapper ----------------------------------------


def gt_layer_forward(A, weight1, weight2=None, H_prev=None, first=True,
                     use_bf16_mxu=False, return_padded=False,
                     rhs_buffer_count=2):
    """JAX/Pallas equivalent of GTLayer.forward.

    A:        (2, B, N, N) float32
    weight1:  (2, 1, 1, 1) float32  (conv1.weight)
    weight2:  (2, 1, 1, 1) float32  (conv2.weight; required if first=True)
    H_prev:   (B, N, N) or (B, n_pad, n_pad) float32 (required if first=False;
              an already-padded H from a previous layer is detected by shape)
    use_bf16_mxu:  store the combined streams as bf16 in HBM (halved bandwidth,
                   ~3-4x MXU rate) with f32 accumulation; ~1e-2 relative error.
    return_padded: skip the final [:, :N, :N] slice (useful between stacked
                   layers; only affects the tiled large-N path).
    rhs_buffer_count: >2 enables pl.Buffered(n) on the RHS stream.
    Returns (H, W) like the torch module.
    """
    E, B, N, _ = A.shape
    assert E == 2
    A = A.astype(jnp.float32)

    # softmax over the size-1 dim of (2,1,1,1) is exactly 1.0; returned as W.
    w1_soft = jax.nn.softmax(weight1.astype(jnp.float32), axis=1)
    if first:
        assert weight2 is not None
        w2_soft = jax.nn.softmax(weight2.astype(jnp.float32), axis=1)
        W = [w1_soft, w2_soft]
    else:
        W = [w1_soft]

    stream_dtype = jnp.bfloat16 if use_bf16_mxu else jnp.float32

    # Fused GTConv pre-pass: conv1(A) == conv2(A) == A[0] + A[1] bit-exactly.
    S = A[0] + A[1]  # (B, N, N) float32

    # ---------------- small-N path: no padding, one block per batch ----------
    if N <= _SMALL_N:
        rhs = S.astype(stream_dtype)
        if first:
            lhs = rhs
        else:
            assert H_prev is not None
            lhs = H_prev[:, :N, :N].astype(stream_dtype)

        blk = pl.BlockSpec((1, N, N), lambda b: (b, 0, 0))
        H = pl.pallas_call(
            _bmm_small_kernel,
            out_shape=jax.ShapeDtypeStruct((B, N, N), jnp.float32),
            grid_spec=pltpu.PrefetchScalarGridSpec(
                num_scalar_prefetch=0,
                grid=(B,),
                in_specs=[blk, blk],
                out_specs=blk,
            ),
            compiler_params=pltpu.CompilerParams(
                dimension_semantics=("parallel",)),
        )(lhs, rhs)
        return H, W

    # ---------------- tiled large-N path --------------------------------------
    n_pad, tile, vmem_limit = _choose_tile(N, jnp.dtype(stream_dtype).itemsize)
    tm = tn = tk = tile

    def pad_nn(x):
        n = x.shape[-1]
        if n == n_pad:
            return x
        return jnp.pad(x, ((0, 0), (0, n_pad - n), (0, n_pad - n)))

    rhs = pad_nn(S).astype(stream_dtype)          # pad + combine + cast: one pass
    if first:
        lhs = rhs                                  # a == b exactly; single HBM array
    else:
        assert H_prev is not None
        lhs = pad_nn(H_prev.astype(jnp.float32)).astype(stream_dtype)

    grid = (B, n_pad // tm, n_pad // tn, n_pad // tk)

    lhs_spec = pl.BlockSpec((1, tm, tk), lambda b, i, j, k: (b, i, k))
    rhs_kwargs = {}
    if rhs_buffer_count and rhs_buffer_count > 2:
        rhs_kwargs["pipeline_mode"] = pl.Buffered(rhs_buffer_count)
    rhs_spec = pl.BlockSpec((1, tk, tn), lambda b, i, j, k: (b, k, j),
                            **rhs_kwargs)
    out_spec = pl.BlockSpec((1, tm, tn), lambda b, i, j, k: (b, i, j))

    H_pad = pl.pallas_call(
        _bmm_tile_kernel,
        out_shape=jax.ShapeDtypeStruct((B, n_pad, n_pad), jnp.float32),
        grid_spec=pltpu.PrefetchScalarGridSpec(
            num_scalar_prefetch=0,
            grid=grid,
            in_specs=[lhs_spec, rhs_spec],
            out_specs=out_spec,
        ),
        compiler_params=pltpu.CompilerParams(
            dimension_semantics=("parallel", "parallel", "parallel",
                                 "arbitrary"),
            vmem_limit_bytes=vmem_limit,
        ),
    )(lhs, rhs)

    if return_padded or n_pad == N:
        return H_pad, W
    return H_pad[:, :N, :N], W


# ----------------------------- reference (numpy float64) ----------------------


def _gt_layer_ref(A, weight1, weight2=None, H_prev=None, first=True):
    A = np.asarray(A, dtype=np.float64)

    def gtconv(A, w):
        w = np.asarray(w, dtype=np.float64)
        e = np.exp(w - w.max(axis=1, keepdims=True))
        sm = e / e.sum(axis=1, keepdims=True)
        return np.sum(A * sm, axis=0)

    if first:
        a = gtconv(A, weight1)
        b = gtconv(A, weight2)
        return np.einsum("bij,bjk->bik", a, b)
    a = gtconv(A, weight1)
    return np.einsum("bij,bjk->bik", np.asarray(H_prev, np.float64), a)


# ----------------------------- main -------------------------------------------

if __name__ == "__main__":
    key = jax.random.PRNGKey(0)
    k_a, k_w1, k_w2, k_a2 = jax.random.split(key, 4)

    # Parameters (nn.init.normal_ equivalent), shape (2,1,1,1)
    weight1 = jax.random.normal(k_w1, (2, 1, 1, 1), dtype=jnp.float32)
    weight2 = jax.random.normal(k_w2, (2, 1, 1, 1), dtype=jnp.float32)

    # --- small-N path (typical GTN graph adjacency sizes) ----------------------
    E, B, N = 2, 2, 16
    A = jax.random.normal(k_a, (E, B, N, N), dtype=jnp.float32)

    H, W = gt_layer_forward(A, weight1, weight2, first=True)
    H = jax.block_until_ready(H)
    H_ref = _gt_layer_ref(A, weight1, weight2, first=True)
    np.testing.assert_allclose(np.asarray(H), H_ref, rtol=1e-4, atol=1e-4)

    H2, W2 = gt_layer_forward(A, weight1, H_prev=H, first=False)
    H2 = jax.block_until_ready(H2)
    H2_ref = _gt_layer_ref(A, weight1, H_prev=H_ref, first=False)
    np.testing.assert_allclose(np.asarray(H2), H2_ref, rtol=1e-4, atol=1e-3)

    # --- tiled path (exercises the 4-D grid with k-axis accumulation) ----------
    N2 = 384
    A_big = jax.random.normal(k_a2, (E, B, N2, N2), dtype=jnp.float32)
    H_big, _ = gt_layer_forward(A_big, weight1, weight2, first=True)
    H_big = jax.block_until_ready(H_big)
    H_big_ref = _gt_layer_ref(A_big, weight1, weight2, first=True)
    np.testing.assert_allclose(np.asarray(H_big), H_big_ref, rtol=1e-4, atol=1e-3)

    H_big2, _ = gt_layer_forward(A_big, weight1, H_prev=H_big, first=False)
    H_big2 = jax.block_until_ready(H_big2)
    H_big2_ref = _gt_layer_ref(A_big, weight1, H_prev=H_big_ref, first=False)
    np.testing.assert_allclose(np.asarray(H_big2), H_big2_ref, rtol=1e-4, atol=1e-2)

    # bf16-stream fast path (f32 accumulation), looser tolerance.
    H_bf, _ = gt_layer_forward(A_big, weight1, weight2, first=True,
                               use_bf16_mxu=True)
    H_bf = jax.block_until_ready(H_bf)
    np.testing.assert_allclose(np.asarray(H_bf), H_big_ref, rtol=5e-2, atol=1.0)

    print("KERNEL_OK")
</pallas_src>

<mosaic_0001>
module attributes {stable_mosaic.version = 11 : i64} {
  func.func @_bmm_small_kernel(%arg0: i32, %arg1: memref<1x16x16xf32, #tpu.memory_space<vmem>>, %arg2: memref<1x16x16xf32, #tpu.memory_space<vmem>>, %arg3: memref<1x16x16xf32, #tpu.memory_space<vmem>>) attributes {dimension_semantics = [#tpu.dimension_semantics<parallel>], iteration_bounds = array<i64: 2>, scalar_prefetch = 0 : i64, scratch_operands = 0 : i64, tpu.core_type = #tpu.core_type<tc>, window_params = [{transform_indices = @transform_0, window_bounds = array<i64: 1, 16, 16>}, {transform_indices = @transform_1, window_bounds = array<i64: 1, 16, 16>}, {transform_indices = @transform_2, window_bounds = array<i64: 1, 16, 16>}]} {
    %c0 = arith.constant 0 : index
    %c0_0 = arith.constant 0 : index
    %c0_1 = arith.constant 0 : index
    %0 = vector.load %arg1[%c0, %c0_0, %c0_1] : memref<1x16x16xf32, #tpu.memory_space<vmem>>, vector<1x16x16xf32>
    %1 = vector.shape_cast %0 : vector<1x16x16xf32> to vector<16x16xf32>
    %c0_2 = arith.constant 0 : index
    %c0_3 = arith.constant 0 : index
    %c0_4 = arith.constant 0 : index
    %2 = vector.load %arg2[%c0_2, %c0_3, %c0_4] : memref<1x16x16xf32, #tpu.memory_space<vmem>>, vector<1x16x16xf32>
    %3 = vector.shape_cast %2 : vector<1x16x16xf32> to vector<16x16xf32>
    %cst = arith.constant dense<0.000000e+00> : vector<16x16xf32>
    %4 = tpu.matmul %1, %3, %cst {dimension_numbers = #tpu.dot_dimension_numbers<[1], [0], [0], [1], [0, 0, 1, 1], [], []>} : vector<16x16xf32>, vector<16x16xf32>, vector<16x16xf32> -> vector<16x16xf32>
    %c0_5 = arith.constant 0 : index
    %c0_6 = arith.constant 0 : index
    %c0_7 = arith.constant 0 : index
    %5 = vector.load %arg3[%c0_5, %c0_6, %c0_7] : memref<1x16x16xf32, #tpu.memory_space<vmem>>, vector<1x16x16xf32>
    %6 = vector.shape_cast %5 : vector<1x16x16xf32> to vector<16x16xf32>
    %7 = vector.shape_cast %4 : vector<16x16xf32> to vector<1x16x16xf32>
    tpu.vector_store %arg3[%c0_5, %c0_6, %c0_7], %7 {strides = array<i32>} : memref<1x16x16xf32, #tpu.memory_space<vmem>>, vector<1x16x16xf32>,
    return
  }
  func.func @transform_0(%arg0: i32) -> (i32, i32, i32) {
    %c0_i32 = arith.constant 0 : i32
    %c0_i32_0 = arith.constant 0 : i32
    %c0_i32_1 = arith.constant 0 : i32
    return %arg0, %c0_i32, %c0_i32_0 : i32, i32, i32
  }
  func.func @transform_1(%arg0: i32) -> (i32, i32, i32) {
    %c0_i32 = arith.constant 0 : i32
    %c0_i32_0 = arith.constant 0 : i32
    %c0_i32_1 = arith.constant 0 : i32
    return %arg0, %c0_i32, %c0_i32_0 : i32, i32, i32
  }
  func.func @transform_2(%arg0: i32) -> (i32, i32, i32) {
    %c0_i32 = arith.constant 0 : i32
    %c0_i32_0 = arith.constant 0 : i32
    %c0_i32_1 = arith.constant 0 : i32
    return %arg0, %c0_i32, %c0_i32_0 : i32, i32, i32
  }
}

</mosaic_0001>

<llo_original>
// kernel: tpu_custom_call.1
$region0: #{tpu_custom_call.1}
  #allocation0 [shape = 'u32[]', space=smem, size = 0x4, offset = 0x4, fixed_abs, tag = 'smem constant byte address 0x4 - core index']
  #allocation1 [shape = 'u32[144,128]{1,0:T(1,128)}', space=vmem, size = 0x12000, scoped, tag = 'internal scratch']
  %s0 = inlined_call_operand.hbm [shape: f32[2,16,16], index: 0, kind: input, shape index: {}]
  %s1 = inlined_call_operand.hbm [shape: f32[2,16,16], index: 1, kind: input, shape index: {}]
  %s2 = inlined_call_operand.hbm [shape: f32[2,16,16], index: 2, kind: output, shape index: {}]
  %s3 = sld [smem:[#allocation0]]
  $region49: #{tpu_custom_call.1} parent=0
    _
  %s5 = ssub.s32 1, %s3
  %s6 = scalar_select 0, %s5, %s3
  $region1: #{tpu_custom_call.1} parent=0
    #allocation2 [shape = 'u8[16384]{0}', space=vmem, size = 0x4000, scoped, tag = 'input window, operand 0']
    #allocation3 [shape = 's32[2]{0}', space=sflag, size = 0x8, scoped, tag = 'scoped memory for tpu_custom_call.1']
    #allocation4 [shape = 's32[2]{0}', space=sflag, size = 0x8, scoped, tag = 'scoped memory for tpu_custom_call.1']
    #allocation5 [shape = 'u8[16384]{0}', space=vmem, size = 0x4000, scoped, tag = 'input window, operand 1']
    #allocation6 [shape = 's32[2]{0}', space=sflag, size = 0x8, scoped, tag = 'scoped memory for tpu_custom_call.1']
    #allocation7 [shape = 'u8[16384]{0}', space=vmem, size = 0x4000, scoped, tag = 'output window, operand 0']
    %7 = vsyncpa [#allocation3], 0
    %s8 = scalar_lea.sflag [#allocation3], 1
    %9 = vsyncpa %s8, 0
    %10 = vsyncpa [#allocation6], 0
    %s11 = scalar_lea.sflag [#allocation6], 1
    %12 = vsyncpa %s11, 0
    %13 = vsyncpa [#allocation4], 0
    %s14 = scalar_lea.sflag [#allocation4], 1
    %15 = vsyncpa %s14, 0
    loop: start=0, step=1, limit=4
    $region2: #{tpu_custom_call.1} parent=1 // loop_pre_header
      _
    $region3: #{tpu_custom_call.1} parent=1 // loop_header
      %s17 = sphi 0, %s21
      %p18 = scmp.ge.s32.totalorder %s17, 4
      %s27 = sphi 0, %s29
      %s30 = sphi 0, %s27
      %s31 = sphi 0, %s30
      %s47 = sphi 0, %s31
      %s53 = sphi 0, %s55
      %s56 = sphi 0, %s53
      %s57 = sphi 0, %s56
      %s73 = sphi 0, %s57
      %s79 = sphi 0, %s81
      %s82 = sphi 0, %s79
      %s83 = sphi 0, %s82
      %s99 = sphi 0, %s83
    $region4: #{tpu_custom_call.1} parent=1 // loop_header_branch
      %20 = sbr.rel (%p18) target = $region8
    $region5: #{tpu_custom_call.1} parent=1 // loop_body
      %s22 = ssub.s32 %s17, 1
      %s23 = ssub.s32 %s17, 2
      %s24 = sadd.s32 %s17, 1
      %s25 = ssub.s32 %s17, %s24
      %p26 = scmp.eq.s32.totalorder %s25, 0
      %s28 = sadd.s32 %s27, 1
      %s29 = scalar_select %p26, %s27, %s28
      %p32 = pneg %p26
      %p33 = scmp.eq.s32.totalorder %s17, 1
      %p34 = por %p32, %p33
      %p35 = scmp.ne.s32.totalorder %s27, %s30
      %p36 = scmp.eq.s32.totalorder %s17, 0
      %p37 = por %p35, %p36
      %p38 = scmp.ne.s32.totalorder %s27, %s30
      %p39 = scmp.eq.s32.totalorder %s22, 1
      %p40 = por %p38, %p39
      %p41 = scmp.ne.s32.totalorder %s30, %s31
      %p42 = scmp.eq.s32.totalorder %s22, 0
      %p43 = por %p41, %p42
      %p44 = scmp.ne.s32.totalorder %s30, %s31
      %p45 = scmp.eq.s32.totalorder %s23, 1
      %p46 = por %p44, %p45
      %p48 = scmp.ne.s32.totalorder %s31, %s47
      %p49 = scmp.eq.s32.totalorder %s23, 0
      %p50 = por %p48, %p49
      %s51 = ssub.s32 %s17, %s24
      %p52 = scmp.eq.s32.totalorder %s51, 0
      %s54 = sadd.s32 %s53, 1
      %s55 = scalar_select %p52, %s53, %s54
      %p58 = pneg %p52
      %p59 = scmp.eq.s32.totalorder %s17, 1
      %p60 = por %p58, %p59
      %p61 = scmp.ne.s32.totalorder %s53, %s56
      %p62 = scmp.eq.s32.totalorder %s17, 0
      %p63 = por %p61, %p62
      %p64 = scmp.ne.s32.totalorder %s53, %s56
      %p65 = scmp.eq.s32.totalorder %s22, 1
      %p66 = por %p64, %p65
      %p67 = scmp.ne.s32.totalorder %s56, %s57
      %p68 = scmp.eq.s32.totalorder %s22, 0
      %p69 = por %p67, %p68
      %p70 = scmp.ne.s32.totalorder %s56, %s57
      %p71 = scmp.eq.s32.totalorder %s23, 1
      %p72 = por %p70, %p71
      %p74 = scmp.ne.s32.totalorder %s57, %s73
      %p75 = scmp.eq.s32.totalorder %s23, 0
      %p76 = por %p74, %p75
      %s77 = ssub.s32 %s17, %s24
      %p78 = scmp.eq.s32.totalorder %s77, 0
      %s80 = sadd.s32 %s79, 1
      %s81 = scalar_select %p78, %s79, %s80
      %p84 = pneg %p78
      %p85 = scmp.eq.s32.totalorder %s17, 1
      %p86 = por %p84, %p85
      %p87 = scmp.ne.s32.totalorder %s79, %s82
      %p88 = scmp.eq.s32.totalorder %s17, 0
      %p89 = por %p87, %p88
      %p90 = scmp.ne.s32.totalorder %s79, %s82
      %p91 = scmp.eq.s32.totalorder %s22, 1
      %p92 = por %p90, %p91
      %p93 = scmp.ne.s32.totalorder %s82, %s83
      %p94 = scmp.eq.s32.totalorder %s22, 0
      %p95 = por %p93, %p94
      %p96 = scmp.ne.s32.totalorder %s82, %s83
      %p97 = scmp.eq.s32.totalorder %s23, 1
      %p98 = por %p96, %p97
      %p100 = scmp.ne.s32.totalorder %s83, %s99
      %p101 = scmp.eq.s32.totalorder %s23, 0
      %p102 = por %p100, %p101
      %p103 = scmp.le.s32.totalorder 1, %s17
      %p104 = scmp.lt.s32.totalorder %s17, 3
      %p105 = pnand %p103, %p104
      %p106 = pneg %p105
      // Predicated region
      $region9: #{tpu_custom_call.1} parent=5 // pred_check
        _
      $region10: #{tpu_custom_call.1} parent=5 // pred_check_branch
        %108 = sbr.rel (%p105) target = $region12
      $region11: #{tpu_custom_call.1} parent=5 // pred_region
        %s109 = ssub.s32 %s17, 1
      $region12: #{tpu_custom_call.1} parent=5 // pred_fallthru
        _
      %p110 = scmp.lt.s32.totalorder %s17, 2
      // Predicated region
      $region13: #{tpu_custom_call.1} parent=5 // pred_check
        %p111 = pneg %p110
      $region14: #{tpu_custom_call.1} parent=5 // pred_check_branch
        %113 = sbr.rel (%p111) target = $region16
      $region15: #{tpu_custom_call.1} parent=5 // pred_region
        // Predicated region
        $region17: #{tpu_custom_call.1} parent=15 // pred_check
          %p114 = pneg %p37
        $region18: #{tpu_custom_call.1} parent=15 // pred_check_branch
          %116 = sbr.rel (%p114) target = $region20
        $region19: #{tpu_custom_call.1} parent=15 // pred_region
          %s117 = sand.u32 %s27, 1
          %s118 = scalar_lea.sflag [#allocation3], %s117
          %s119 = sand.u32 %s27, 1
          %s120 = smul.addr %s119, 16
          %s121 = scalar_lea.vmem [#allocation2], %s120
          %s123 = ssub.s32 256, 256
          %124 = vsyncadd %s118, %s123
          %s125 = smul.addr %s17, 2
          %s126 = smul.addr %s125, 128
          %s127 = scalar_lea.hbm %s0, %s126
          %s128 = sshll.u32 %s121, 4
          %s129 = int_to_ptr.vmem [resolvable:$true] %s128
          %134 = dma.hbm_to_vmem [thread:$0]  %s127, 256, %s129, %s118, 128, 128, 8
        $region20: #{tpu_custom_call.1} parent=15 // pred_fallthru
          _
        // Predicated region
        $region21: #{tpu_custom_call.1} parent=15 // pred_check
          %p135 = pneg %p63
        $region22: #{tpu_custom_call.1} parent=15 // pred_check_branch
          %137 = sbr.rel (%p135) target = $region24
        $region23: #{tpu_custom_call.1} parent=15 // pred_region
          %s138 = sand.u32 %s53, 1
          %s139 = scalar_lea.sflag [#allocation6], %s138
          %s140 = sand.u32 %s53, 1
          %s141 = smul.addr %s140, 16
          %s142 = scalar_lea.vmem [#allocation5], %s141
          %s144 = ssub.s32 256, 256
          %145 = vsyncadd %s139, %s144
          %s146 = smul.addr %s17, 2
          %s147 = smul.addr %s146, 128
          %s148 = scalar_lea.hbm %s1, %s147
          %s149 = sshll.u32 %s142, 4
          %s150 = int_to_ptr.vmem [resolvable:$true] %s149
          %155 = dma.hbm_to_vmem [thread:$0]  %s148, 256, %s150, %s139, 128, 128, 8
        $region24: #{tpu_custom_call.1} parent=15 // pred_fallthru
          _
      $region16: #{tpu_custom_call.1} parent=5 // pred_fallthru
        _
      %p156 = scmp.le.s32.totalorder 1, %s17
      %p157 = scmp.lt.s32.totalorder %s17, 3
      %p158 = pnand %p156, %p157
      %p159 = pneg %p158
      // Predicated region
      $region25: #{tpu_custom_call.1} parent=5 // pred_check
        _
      $region26: #{tpu_custom_call.1} parent=5 // pred_check_branch
        %161 = sbr.rel (%p158) target = $region28
      $region27: #{tpu_custom_call.1} parent=5 // pred_region
        %s162 = ssub.s32 %s17, 1
        %s163 = sand.u32 %s30, 1
        %s164 = scalar_lea.sflag [#allocation3], %s163
        %s165 = sand.u32 %s30, 1
        %s166 = smul.addr %s165, 16
        %s167 = scalar_lea.vmem [#allocation2], %s166
        // Predicated region
        $region29: #{tpu_custom_call.1} parent=27 // pred_check
          %p168 = pneg %p43
        $region30: #{tpu_custom_call.1} parent=27 // pred_check_branch
          %170 = sbr.rel (%p168) target = $region32
        $region31: #{tpu_custom_call.1} parent=27 // pred_region
          %171 = dma.done %s164, 256
        $region32: #{tpu_custom_call.1} parent=27 // pred_fallthru
          _
        %s172 = sand.u32 %s56, 1
        %s173 = scalar_lea.sflag [#allocation6], %s172
        %s174 = sand.u32 %s56, 1
        %s175 = smul.addr %s174, 16
        %s176 = scalar_lea.vmem [#allocation5], %s175
        // Predicated region
        $region33: #{tpu_custom_call.1} parent=27 // pred_check
          %p177 = pneg %p69
        $region34: #{tpu_custom_call.1} parent=27 // pred_check_branch
          %179 = sbr.rel (%p177) target = $region36
        $region35: #{tpu_custom_call.1} parent=27 // pred_region
          %180 = dma.done %s173, 256
        $region36: #{tpu_custom_call.1} parent=27 // pred_fallthru
          _
        %s181 = sand.u32 %s30, 1
        %s182 = scalar_lea.sflag [#allocation3], %s181
        %s183 = sand.u32 %s30, 1
        %s184 = smul.addr %s183, 16
        %s185 = scalar_lea.vmem [#allocation2], %s184
        %p186 = pneg %p43
        %p187 = pneg %p40
        %s188 = sand.u32 %s56, 1
        %s189 = scalar_lea.sflag [#allocation6], %s188
        %s190 = sand.u32 %s56, 1
        %s191 = smul.addr %s190, 16
        %s192 = scalar_lea.vmem [#allocation5], %s191
        %p193 = pneg %p69
        %p194 = pneg %p66
        %p195 = pneg %p95
        %p196 = pneg %p92
        %s197 = sand.u32 %s82, 1
        %s198 = scalar_lea.sflag [#allocation4], %s197
        %s199 = sand.u32 %s82, 1
        %s200 = smul.addr %s199, 16
        %s201 = scalar_lea.vmem [#allocation7], %s200
        %v202 = vld [vmem:[%s167] sm:$0xff]
        %v203 = vld [vmem:[%s167 + $0x8] sm:$0xff]
        %v204 = vld [vmem:[%s176] sm:$0xff]
        %v205 = vld [vmem:[%s176 + $0x8] sm:$0xff]
        %vm206 = vcmask 130048
        %v208 = vsel %vm206, %v202, 0
        %v211 = vsel %vm206, %v203, 0
        %213 = vmatprep.subr.mxu0 0.0
        %214 = vmatpush1.msra.mxu0 %v204
        %215 = vmatprep.subr.mxu0 0.0
        %216 = vmatpush1.msra.mxu0 %v205
        %217 = vmatprep.subr.mxu0 0.0
        %218 = vmatpush1.msra.mxu0 0.0
        %219 = vmatprep.subr.mxu0 0.0
        %220 = vmatpush1.msra.mxu0 0.0
        %221 = vmatprep.subr.mxu0 0.0
        %222 = vmatpush1.msra.mxu0 0.0
        %223 = vmatprep.subr.mxu0 0.0
        %224 = vmatpush1.msra.mxu0 0.0
        %225 = vmatprep.subr.mxu0 0.0
        %226 = vmatpush1.msra.mxu0 0.0
        %227 = vmatprep.subr.mxu0 0.0
        %228 = vmatpush1.msra.mxu0 0.0
        %229 = vmatprep.subr.mxu0 0.0
        %230 = vmatpush1.msra.mxu0 0.0
        %231 = vmatprep.subr.mxu0 0.0
        %232 = vmatpush1.msra.mxu0 0.0
        %233 = vmatprep.subr.mxu0 0.0
        %234 = vmatpush1.msra.mxu0 0.0
        %235 = vmatprep.subr.mxu0 0.0
        %236 = vmatpush1.msra.mxu0 0.0
        %237 = vmatprep.subr.mxu0 0.0
        %238 = vmatpush1.msra.mxu0 0.0
        %239 = vmatprep.subr.mxu0 0.0
        %240 = vmatpush1.msra.mxu0 0.0
        %241 = vmatprep.subr.mxu0 0.0
        %242 = vmatpush1.msra.mxu0 0.0
        %243 = vmatprep.subr.mxu0 0.0
        %244 = vmatpush1.msra.mxu0 0.0
        %245 = vmatprep.subr.mxu0 0.0
        %246 = vmatpush1.msra.mxu0 0.0
        %247 = vmatprep.subr.mxu0 0.0
        %248 = vmatpush1.msra.mxu0 0.0
        %249 = vmatprep.subr.mxu0 0.0
        %250 = vmatpush1.msra.mxu0 0.0
        %251 = vmatprep.subr.mxu0 0.0
        %252 = vmatpush1.msra.mxu0 0.0
        %253 = vmatprep.subr.mxu0 0.0
        %254 = vmatpush1.msra.mxu0 0.0
        %255 = vmatprep.subr.mxu0 0.0
        %256 = vmatpush1.msra.mxu0 0.0
        %257 = vmatprep.subr.mxu0 0.0
        %258 = vmatpush1.msra.mxu0 0.0
        %259 = vmatprep.subr.mxu0 0.0
        %260 = vmatpush1.msra.mxu0 0.0
        %261 = vmatprep.subr.mxu0 0.0
        %262 = vmatpush1.msra.mxu0 0.0
        %263 = vmatprep.subr.mxu0 0.0
        %264 = vmatpush1.msra.mxu0 0.0
        %265 = vmatprep.subr.mxu0 0.0
        %266 = vmatpush1.msra.mxu0 0.0
        %267 = vmatprep.subr.mxu0 0.0
        %268 = vmatpush1.msra.mxu0 0.0
        %269 = vmatprep.subr.mxu0 0.0
        %270 = vmatpush1.msra.mxu0 0.0
        %271 = vmatprep.subr.mxu0 0.0
        %272 = vmatpush1.msra.mxu0 0.0
        %273 = vmatprep.subr.mxu0 0.0
        %274 = vmatpush1.msra.mxu0 0.0
        %275 = vmatprep.subr.mxu0 0.0
        %276 = vmatpush1.msra.mxu0 0.0
        %277 = vmatprep.mubr.f32.mxu0 0.0
        %278 = vmatmul.mubr.f32.gmra.mrb[0].mxu0 %v208
        %v279 = vpop.f32.mrb[0].mxu0
        %v280 = vadd.f32 0.0, %v279
        %v281 = vpop.f32.mrb[0].mxu0
        %282 = vmatprep.mubr.f32.mxu0 0.0
        %283 = vmatmul.mubr.f32.gmra.mrb[0].mxu0 %v211
        %v284 = vpop.f32.mrb[0].mxu0
        %v285 = vadd.f32 0.0, %v284
        %v286 = vpop.f32.mrb[0].mxu0
        %287 = vdwg.mxu0
        %288 = vst.msk [vmem:[%s201] sm:$0xff] %vm206, %v280
        %289 = vst.msk [vmem:[%s201 + $0x8] sm:$0xff] %vm206, %v285
        %s290 = sand.u32 %s82, 1
        %s291 = scalar_lea.sflag [#allocation4], %s290
        %s292 = sand.u32 %s82, 1
        %s293 = smul.addr %s292, 16
        %s294 = scalar_lea.vmem [#allocation7], %s293
        // Predicated region
        $region37: #{tpu_custom_call.1} parent=27 // pred_check
          %p295 = pneg %p92
        $region38: #{tpu_custom_call.1} parent=27 // pred_check_branch
          %297 = sbr.rel (%p295) target = $region40
        $region39: #{tpu_custom_call.1} parent=27 // pred_region
          %s299 = ssub.s32 256, 256
          %300 = vsyncadd %s291, %s299
          %s301 = smul.addr %s22, 2
          %s302 = smul.addr %s301, 128
          %s303 = scalar_lea.hbm %s2, %s302
          %s304 = sshll.u32 %s294, 4
          %s305 = int_to_ptr.vmem [resolvable:$true] %s304
          %310 = dma.vmem_to_hbm [thread:$0]  %s305, 256, %s303, %s291, 128, 128, 8
        $region40: #{tpu_custom_call.1} parent=27 // pred_fallthru
          _
      $region28: #{tpu_custom_call.1} parent=5 // pred_fallthru
        _
      %p311 = scmp.le.s32.totalorder 2, %s17
      // Predicated region
      $region41: #{tpu_custom_call.1} parent=5 // pred_check
        %p312 = pneg %p311
      $region42: #{tpu_custom_call.1} parent=5 // pred_check_branch
        %314 = sbr.rel (%p312) target = $region44
      $region43: #{tpu_custom_call.1} parent=5 // pred_region
        %s315 = ssub.s32 %s17, 2
        // Predicated region
        $region45: #{tpu_custom_call.1} parent=43 // pred_check
          %p316 = pneg %p98
        $region46: #{tpu_custom_call.1} parent=43 // pred_check_branch
          %318 = sbr.rel (%p316) target = $region48
        $region47: #{tpu_custom_call.1} parent=43 // pred_region
          %s319 = sand.u32 %s83, 1
          %s320 = scalar_lea.sflag [#allocation4], %s319
          %s321 = sand.u32 %s83, 1
          %s322 = smul.addr %s321, 16
          %s323 = scalar_lea.vmem [#allocation7], %s322
          %324 = dma.done %s320, 256
        $region48: #{tpu_custom_call.1} parent=43 // pred_fallthru
          _
      $region44: #{tpu_custom_call.1} parent=5 // pred_fallthru
        _
    $region6: #{tpu_custom_call.1} parent=1 // loop_footer
      %s21 = sadd.s32 1, %s17
    $region7: #{tpu_custom_call.1} parent=1 // loop_footer_branch
      %16 = sbr.rel target = $region3
    $region8: #{tpu_custom_call.1} parent=1 // loop_exit
      _
    %325 = vsyncpa [#allocation3], 1
    %s326 = scalar_lea.sflag [#allocation3], 1
    %327 = vsyncpa %s326, 1
    %328 = vsyncpa [#allocation6], 1
    %s329 = scalar_lea.sflag [#allocation6], 1
    %330 = vsyncpa %s329, 1
    %331 = vsyncpa [#allocation4], 1
    %s332 = scalar_lea.sflag [#allocation4], 1
    %333 = vsyncpa %s332, 1

</llo_original>
